<compile_context>
chip_gen: v7x
topology: tpu7x:2x2x1
jax: 0.10.0
libtpu: 0.0.40
codegen_flags: <defaults>
</compile_context>

<pallas_src>
import math

import jax
import jax.numpy as jnp
from jax.experimental import pallas as pl
from jax.experimental.pallas import tpu as pltpu

_MAX_COL_TILE = 32768          # lanes; lane-dense sweet spot, bytes capped by budget
_MIN_SPLIT_BYTES = 1 << 20     # force >=2 grid steps above this (feeds both v7x TCs)
_FOOTPRINT_CAP = 24 << 20      # target total pipelined VMEM (safe on v7x's 64 MiB)


def _vmem_capacity_bytes():
    try:
        return int(pltpu.get_tpu_info().vmem_capacity_bytes)
    except Exception:
        return 64 << 20        # conservative fallback (v7x per-TC physical VMEM)


def _block_budget_bytes():
    # Double-buffered footprint ~= 4x (x/out block) + 4x (small scale/bias block),
    # so keep one block <= ~vmem/16, capped at 4 MiB (already past the f32
    # streaming roofline knee; bigger only shaves the ~0.35us/step overhead).
    vmem = _vmem_capacity_bytes()
    return max(1 << 20, min(4 << 20, vmem // 16))


def _round_up(x, m):
    return ((x + m - 1) // m) * m


def _guide_block_kernel(x_ref, scale_ref, bias_ref, o_ref):
    # x_ref/o_ref:        (row_tile, col_tile)
    # scale_ref/bias_ref: (base_rows, col_tile), row-periodic with period C
    # row_tile is a static multiple of base_rows, and base_rows is a multiple
    # of the sublane packing, so the replication below is whole-vreg copies.
    rep = x_ref.shape[0] // scale_ref.shape[0]
    s = scale_ref[...]
    b = bias_ref[...]
    if rep > 1:
        s = jnp.tile(s, (rep, 1))
        b = jnp.tile(b, (rep, 1))
    o_ref[...] = x_ref[...] * s + b


def _pick_tiles(rows, cols, itemsize, base_rows, budget):
    cols_max = _round_up(cols, 128)
    rows_max = _round_up(rows, base_rows)

    # Lane-dense first: grow the lane dim, bounded by budget at base_rows rows.
    col_cap = max(128, (budget // (base_rows * itemsize)) // 128 * 128)
    col_tile = min(cols_max, _MAX_COL_TILE, col_cap)
    # Then grow rows (multiples of base_rows) to fill the budget.
    row_cap = max(base_rows, (budget // (col_tile * itemsize)) // base_rows * base_rows)
    row_tile = min(rows_max, row_cap)

    # Keep both v7x TensorCores busy on anything big enough to be worth it.
    if (pl.cdiv(rows, row_tile) * pl.cdiv(cols, col_tile) == 1
            and rows * cols * itemsize >= _MIN_SPLIT_BYTES):
        if row_tile >= 2 * base_rows:
            row_tile = _round_up(pl.cdiv(rows, 2), base_rows)
        elif col_tile >= 256:
            col_tile = _round_up(pl.cdiv(cols, 2), 128)

    # Double-buffered footprint: 2*(x + out) blocks + 2*(scale + bias) blocks.
    def footprint(rt, ct):
        return 4 * (rt + base_rows) * ct * itemsize

    while footprint(row_tile, col_tile) > _FOOTPRINT_CAP and (
            row_tile > base_rows or col_tile > 128):
        if row_tile > base_rows:
            row_tile = max(base_rows, _round_up(row_tile // 2, base_rows))
        else:
            col_tile = max(128, _round_up(col_tile // 2, 128))

    return row_tile, col_tile


def guide_block(x, s_c, s_w, s_h, b, *, donate_x=False):
    N, C, W, H = x.shape
    assert s_c.shape == (1, C, 1, 1)
    assert s_w.shape == (1, 1, W, 1)
    assert s_h.shape == (1, 1, 1, H)
    assert b.shape == (1, C, 1, 1)

    cols = W * H
    rows = N * C
    itemsize = jnp.dtype(x.dtype).itemsize
    pack = max(8, 32 // itemsize)            # sublanes per 32-bit-packed group
    base_rows = math.lcm(C, pack)            # smallest C-periodic, packing-aligned row count

    # Batch-independent scale/bias, hoisted once and laid out lane-dense as
    # small (base_rows, W*H) slabs (row-periodic in the channel).
    scale = (1.0 + s_c + s_w + s_h).astype(x.dtype).reshape(C, cols)
    bias = jnp.broadcast_to(b.reshape(C, 1), (C, cols)).astype(x.dtype)
    rep_base = base_rows // C
    scale_slab = jnp.tile(scale, (rep_base, 1))
    bias_slab = jnp.tile(bias, (rep_base, 1))
    x2 = x.reshape(rows, cols)

    budget = _block_budget_bytes()
    row_tile, col_tile = _pick_tiles(rows, cols, itemsize, base_rows, budget)

    # Column axis outer, row axis inner: the scale/bias block index depends
    # only on the outer axis, so sequential inner steps reuse the resident
    # slab tile (treated as a nicety, not a constraint, under megacore).
    grid = (pl.cdiv(cols, col_tile), pl.cdiv(rows, row_tile))

    footprint = 4 * (row_tile + base_rows) * col_tile * itemsize
    vmem_limit = int(max(32 << 20, min(footprint + (8 << 20), 96 << 20)))

    kwargs = {}
    if donate_x:
        # Requires the caller to donate x; output reuses x's HBM buffer.
        kwargs["input_output_aliases"] = {0: 0}

    out2 = pl.pallas_call(
        _guide_block_kernel,
        out_shape=jax.ShapeDtypeStruct((rows, cols), x.dtype),
        grid=grid,
        in_specs=[
            pl.BlockSpec((row_tile, col_tile), lambda j, i: (i, j)),
            pl.BlockSpec((base_rows, col_tile), lambda j, i: (0, j)),
            pl.BlockSpec((base_rows, col_tile), lambda j, i: (0, j)),
        ],
        out_specs=pl.BlockSpec((row_tile, col_tile), lambda j, i: (i, j)),
        compiler_params=pltpu.CompilerParams(
            dimension_semantics=("parallel", "parallel"),
            vmem_limit_bytes=vmem_limit),
        **kwargs,
    )(x2, scale_slab, bias_slab)

    return out2.reshape(N, C, W, H)


def guide_block_ref(x, s_c, s_w, s_h, b):
    # pure-JAX reference of the torch forward
    return x * (1.0 + s_c + s_w + s_h) + b


if __name__ == "__main__":
    # Small shapes consistent with the module: batch=2, channels=4, W=H=16.
    N, C, W, H = 2, 4, 16, 16

    key = jax.random.PRNGKey(0)
    kx, kc, kw, kh, kb = jax.random.split(key, 5)

    x = jax.random.normal(kx, (N, C, W, H), dtype=jnp.float32)
    # The torch module initializes these to zeros; use small deterministic
    # non-zero values so the broadcast semantics are actually exercised.
    s_c = 0.1 * jax.random.normal(kc, (1, C, 1, 1), dtype=jnp.float32)
    s_w = 0.1 * jax.random.normal(kw, (1, 1, W, 1), dtype=jnp.float32)
    s_h = 0.1 * jax.random.normal(kh, (1, 1, 1, H), dtype=jnp.float32)
    b = 0.1 * jax.random.normal(kb, (1, C, 1, 1), dtype=jnp.float32)

    out = guide_block(x, s_c, s_w, s_h, b)
    out = jax.block_until_ready(out)

    ref = guide_block_ref(x, s_c, s_w, s_h, b)
    assert out.shape == (N, C, W, H)
    assert out.dtype == jnp.float32
    assert jnp.allclose(out, ref, atol=1e-6, rtol=1e-6), "mismatch vs reference"

    print("KERNEL_OK")
</pallas_src>

<mosaic_0001>
module attributes {stable_mosaic.version = 11 : i64} {
  func.func @_guide_block_kernel(%arg0: i32, %arg1: i32, %arg2: memref<8x256xf32, #tpu.memory_space<vmem>>, %arg3: memref<8x256xf32, #tpu.memory_space<vmem>>, %arg4: memref<8x256xf32, #tpu.memory_space<vmem>>, %arg5: memref<8x256xf32, #tpu.memory_space<vmem>>) attributes {dimension_semantics = [#tpu.dimension_semantics<parallel>, #tpu.dimension_semantics<parallel>], iteration_bounds = array<i64: 1, 1>, scalar_prefetch = 0 : i64, scratch_operands = 0 : i64, tpu.core_type = #tpu.core_type<tc>, window_params = [{transform_indices = @transform_0, window_bounds = array<i64: 8, 256>}, {transform_indices = @transform_1, window_bounds = array<i64: 8, 256>}, {transform_indices = @transform_2, window_bounds = array<i64: 8, 256>}, {transform_indices = @transform_3, window_bounds = array<i64: 8, 256>}]} {
    %c0 = arith.constant 0 : index
    %c0_0 = arith.constant 0 : index
    %0 = vector.load %arg3[%c0, %c0_0] : memref<8x256xf32, #tpu.memory_space<vmem>>, vector<8x256xf32>
    %c0_1 = arith.constant 0 : index
    %c0_2 = arith.constant 0 : index
    %1 = vector.load %arg4[%c0_1, %c0_2] : memref<8x256xf32, #tpu.memory_space<vmem>>, vector<8x256xf32>
    %c0_3 = arith.constant 0 : index
    %c0_4 = arith.constant 0 : index
    %2 = vector.load %arg2[%c0_3, %c0_4] : memref<8x256xf32, #tpu.memory_space<vmem>>, vector<8x256xf32>
    %3 = arith.mulf %2, %0 : vector<8x256xf32>
    %4 = arith.addf %3, %1 : vector<8x256xf32>
    %c0_5 = arith.constant 0 : index
    %c0_6 = arith.constant 0 : index
    %5 = vector.load %arg5[%c0_5, %c0_6] : memref<8x256xf32, #tpu.memory_space<vmem>>, vector<8x256xf32>
    tpu.vector_store %arg5[%c0_5, %c0_6], %4 {strides = array<i32>} : memref<8x256xf32, #tpu.memory_space<vmem>>, vector<8x256xf32>,
    return
  }
  func.func @transform_0(%arg0: i32, %arg1: i32) -> (i32, i32) {
    %c0_i32 = arith.constant 0 : i32
    return %arg1, %arg0 : i32, i32
  }
  func.func @transform_1(%arg0: i32, %arg1: i32) -> (i32, i32) {
    %c0_i32 = arith.constant 0 : i32
    %c0_i32_0 = arith.constant 0 : i32
    return %c0_i32, %arg0 : i32, i32
  }
  func.func @transform_2(%arg0: i32, %arg1: i32) -> (i32, i32) {
    %c0_i32 = arith.constant 0 : i32
    %c0_i32_0 = arith.constant 0 : i32
    return %c0_i32, %arg0 : i32, i32
  }
  func.func @transform_3(%arg0: i32, %arg1: i32) -> (i32, i32) {
    %c0_i32 = arith.constant 0 : i32
    return %arg1, %arg0 : i32, i32
  }
}

</mosaic_0001>

<llo_original>
// kernel: tpu_custom_call.1
$region0: #{tpu_custom_call.1}
  #allocation0 [shape = 'u32[]', space=smem, size = 0x4, offset = 0x4, fixed_abs, tag = 'smem constant byte address 0x4 - core index']
  #allocation1 [shape = 'u32[144,128]{1,0:T(1,128)}', space=vmem, size = 0x12000, scoped, tag = 'internal scratch']
  %s0 = inlined_call_operand.hbm [shape: f32[8,256], index: 0, kind: input, shape index: {}]
  %s1 = inlined_call_operand.hbm [shape: f32[8,256], index: 1, kind: input, shape index: {}]
  %s2 = inlined_call_operand.hbm [shape: f32[8,256], index: 2, kind: input, shape index: {}]
  %s3 = inlined_call_operand.hbm [shape: f32[8,256], index: 3, kind: output, shape index: {}]
  %s4 = sld [smem:[#allocation0]]
  $region34: #{tpu_custom_call.1} parent=0
    _
  %s6 = ssub.s32 1, %s4
  %s7 = scalar_select 0, %s6, %s4
  $region1: #{tpu_custom_call.1} parent=0
    #allocation2 [shape = 'u8[8192]{0}', space=vmem, size = 0x2000, scoped, tag = 'input window, operand 0, single buffered']
    #allocation3 [shape = 's32[1]{0}', space=sflag, size = 0x4, scoped, tag = 'scoped memory for tpu_custom_call.1']
    #allocation4 [shape = 's32[1]{0}', space=sflag, size = 0x4, scoped, tag = 'scoped memory for tpu_custom_call.1']
    #allocation5 [shape = 'u8[8192]{0}', space=vmem, size = 0x2000, scoped, tag = 'input window, operand 1, single buffered']
    #allocation6 [shape = 's32[1]{0}', space=sflag, size = 0x4, scoped, tag = 'scoped memory for tpu_custom_call.1']
    #allocation7 [shape = 'u8[8192]{0}', space=vmem, size = 0x2000, scoped, tag = 'input window, operand 2, single buffered']
    #allocation8 [shape = 'u8[8192]{0}', space=vmem, size = 0x2000, scoped, tag = 'output window, operand 0, single buffered']
    %8 = vsyncpa [#allocation3], 0
    %9 = vsyncpa [#allocation6], 0
    %10 = vsyncpa [#allocation4], 0
    // Predicated region
    $region2: #{tpu_custom_call.1} parent=1 // pred_check
      _
    $region3: #{tpu_custom_call.1} parent=1 // pred_check_branch
      %12 = sbr.rel (0) target = $region5
    $region4: #{tpu_custom_call.1} parent=1 // pred_region
      %s14 = ssub.s32 256, 256
      %15 = vsyncadd [#allocation3], %s14
      %s17 = sshll.u32 [#allocation2], 4
      %s18 = int_to_ptr.vmem [resolvable:$true] %s17
      %20 = dma.hbm_to_vmem [thread:$0]  %s0, 256, %s18, [#allocation3]
    $region5: #{tpu_custom_call.1} parent=1 // pred_fallthru
      _
    // Predicated region
    $region6: #{tpu_custom_call.1} parent=1 // pred_check
      _
    $region7: #{tpu_custom_call.1} parent=1 // pred_check_branch
      %22 = sbr.rel (0) target = $region9
    $region8: #{tpu_custom_call.1} parent=1 // pred_region
      %s24 = ssub.s32 256, 256
      %25 = vsyncadd [#allocation6], %s24
      %s27 = sshll.u32 [#allocation5], 4
      %s28 = int_to_ptr.vmem [resolvable:$true] %s27
      %30 = dma.hbm_to_vmem [thread:$0]  %s1, 256, %s28, [#allocation6]
    $region9: #{tpu_custom_call.1} parent=1 // pred_fallthru
      _
    // Predicated region
    $region10: #{tpu_custom_call.1} parent=1 // pred_check
      _
    $region11: #{tpu_custom_call.1} parent=1 // pred_check_branch
      %32 = sbr.rel (0) target = $region13
    $region12: #{tpu_custom_call.1} parent=1 // pred_region
      %s34 = ssub.s32 256, 256
      %35 = vsyncadd [#allocation6], %s34
      %s37 = sshll.u32 [#allocation7], 4
      %s38 = int_to_ptr.vmem [resolvable:$true] %s37
      %40 = dma.hbm_to_vmem [thread:$0]  %s2, 256, %s38, [#allocation6]
    $region13: #{tpu_custom_call.1} parent=1 // pred_fallthru
      _
    // Predicated region
    $region14: #{tpu_custom_call.1} parent=1 // pred_check
      _
    $region15: #{tpu_custom_call.1} parent=1 // pred_check_branch
      %42 = sbr.rel (0) target = $region17
    $region16: #{tpu_custom_call.1} parent=1 // pred_region
      %43 = dma.done [#allocation3], 256
    $region17: #{tpu_custom_call.1} parent=1 // pred_fallthru
      _
    // Predicated region
    $region18: #{tpu_custom_call.1} parent=1 // pred_check
      _
    $region19: #{tpu_custom_call.1} parent=1 // pred_check_branch
      %45 = sbr.rel (0) target = $region21
    $region20: #{tpu_custom_call.1} parent=1 // pred_region
      %46 = dma.done [#allocation6], 256
    $region21: #{tpu_custom_call.1} parent=1 // pred_fallthru
      _
    // Predicated region
    $region22: #{tpu_custom_call.1} parent=1 // pred_check
      _
    $region23: #{tpu_custom_call.1} parent=1 // pred_check_branch
      %48 = sbr.rel (0) target = $region25
    $region24: #{tpu_custom_call.1} parent=1 // pred_region
      %49 = dma.done [#allocation6], 256
    $region25: #{tpu_custom_call.1} parent=1 // pred_fallthru
      _
    %v50 = vld [vmem:[#allocation5] sm:$0xff]
    %v51 = vld [vmem:[#allocation5 + $0x8] sm:$0xff]
    %v52 = vld [vmem:[#allocation7] sm:$0xff]
    %v53 = vld [vmem:[#allocation7 + $0x8] sm:$0xff]
    %v54 = vld [vmem:[#allocation2] sm:$0xff]
    %v55 = vld [vmem:[#allocation2 + $0x8] sm:$0xff]
    %v56 = vmul.f32 %v54, %v50
    %v57 = vmul.f32 %v55, %v51
    %v58 = vadd.f32 %v56, %v52
    %v59 = vadd.f32 %v57, %v53
    %60 = vst [vmem:[#allocation8] sm:$0xff] %v58
    %61 = vst [vmem:[#allocation8 + $0x8] sm:$0xff] %v59
    // Predicated region
    $region26: #{tpu_custom_call.1} parent=1 // pred_check
      _
    $region27: #{tpu_custom_call.1} parent=1 // pred_check_branch
      %63 = sbr.rel (0) target = $region29
    $region28: #{tpu_custom_call.1} parent=1 // pred_region
      %s65 = ssub.s32 256, 256
      %66 = vsyncadd [#allocation4], %s65
      %s68 = sshll.u32 [#allocation8], 4
      %s69 = int_to_ptr.vmem [resolvable:$true] %s68
      %71 = dma.vmem_to_hbm [thread:$0]  %s69, 256, %s3, [#allocation4]
    $region29: #{tpu_custom_call.1} parent=1 // pred_fallthru
      _
    // Predicated region
    $region30: #{tpu_custom_call.1} parent=1 // pred_check
      _
    $region31: #{tpu_custom_call.1} parent=1 // pred_check_branch
      %73 = sbr.rel (0) target = $region33
    $region32: #{tpu_custom_call.1} parent=1 // pred_region
      %74 = dma.done [#allocation4], 256
    $region33: #{tpu_custom_call.1} parent=1 // pred_fallthru
      _
    %75 = vsyncpa [#allocation3], 1
    %76 = vsyncpa [#allocation6], 1
    %77 = vsyncpa [#allocation4], 1

</llo_original>
